<compile_context>
chip_gen: v6e
topology: v6e:2x2x1
jax: 0.10.0
libtpu: 0.0.40
codegen_flags: <defaults>
</compile_context>

<pallas_src>
import jax
import jax.numpy as jnp
from jax import lax
from jax.experimental import pallas as pl
from jax.experimental.pallas import tpu as pltpu


# ----------------------------- model dims -----------------------------------
B = 2          # batch
T_IN = 8       # encoder sequence length
E = 24         # embedding dim
H = 32         # decoder hidden dim (dec_hidden)
D_ENC = 48     # encoder hidden dim (enc_hidden)
L = 2          # LSTM num_layers
V = 64         # vocab size

# --------------------- packed / padded layout constants ----------------------
IN_PAD = H                      # LSTM input lanes padded to H (E=24 -> 32); needs E <= H
LSTM_BLOCK = IN_PAD + H         # 64 packed rows per LSTM layer: [w_ih^T ; w_hh^T]
D_PAD = 128                     # lane-padded width (enc / context / gates / logits)

OFF_WIN = LSTM_BLOCK * L              # 128: attention w_in^T          (H,   128)
OFF_WOUT_CTX = OFF_WIN + H            # 160: w_out^T rows for context  (128, 128)
OFF_WOUT_DEC = OFF_WOUT_CTX + D_PAD   # 288: w_out^T rows for dec_out  (H,   128)
OFF_WLIN = OFF_WOUT_DEC + H           # 320: out_lin^T (rows padded)   (128, 128)
OFF_BIAS = OFF_WLIN + D_PAD           # 448: bias rows [lstm_0, lstm_1, b_out, b_lin]
W_ROWS = OFF_BIAS + 16                # 464: padded to a multiple of 16 (bf16 packing)

assert E <= IN_PAD and D_ENC <= D_PAD and V <= D_PAD and B * T_IN <= D_PAD
assert 4 * H == D_PAD                 # gate width == lane-padded width


# --------------------------------- kernel ------------------------------------
def make_decoder_kernel(t_in):
    Tc = t_in

    def kernel(tok_ref, embed_ref, hc_ref, enc_ref, w_ref, out_ref, xh_ref):
        step = pl.program_id(0)

        # ---- embedding lookup (nn.Dropout is identity in eval mode) ----
        # One-hot x table MXU gather: exact in f32, needs no dynamic sublane
        # indexing, and keeps the whole per-token path inside the kernel
        # (token ids come from scalar prefetch in SMEM).
        row = lax.broadcasted_iota(jnp.int32, (B, V), 0)
        col = lax.broadcasted_iota(jnp.int32, (B, V), 1)
        onehot = jnp.zeros((B, V), jnp.float32)
        for b in range(B):
            tok_b = tok_ref[step * B + b]
            onehot = jnp.where((row == b) & (col == tok_b), 1.0, onehot)
        emb = jnp.dot(onehot, embed_ref[...],
                      preferred_element_type=jnp.float32)            # (B, IN_PAD)
        xh_ref[:, 0:IN_PAD] = emb                                     # x half of [x | h]

        biases = w_ref[OFF_BIAS:OFF_BIAS + 8, :].astype(jnp.float32)  # (8, 128)

        # ---- num_layers LSTM, single time step, PyTorch gate order [i, f, g, o] ----
        h_new = None
        for l in range(L):
            xh_ref[:, IN_PAD:LSTM_BLOCK] = hc_ref[0, l]               # h half of [x | h]
            xh = xh_ref[...].astype(jnp.bfloat16)                     # (B, 64)
            base = l * LSTM_BLOCK
            gates = jnp.dot(xh, w_ref[base:base + LSTM_BLOCK, :],     # ONE MXU op / layer
                            preferred_element_type=jnp.float32) + biases[l:l + 1, :]
            # one EUP exp + one exact divide over the full 4H-lane gate vreg
            sig = 1.0 / (1.0 + jnp.exp(-gates))
            i_g = sig[:, 0 * H:1 * H]
            f_g = sig[:, 1 * H:2 * H]
            o_g = sig[:, 3 * H:4 * H]
            g_g = jnp.tanh(gates[:, 2 * H:3 * H])
            c_new = f_g * hc_ref[1, l] + i_g * g_g
            h_new = o_g * jnp.tanh(c_new)                             # (B, H)
            if l + 1 < L:
                xh_ref[:, 0:H] = h_new                                # input of next layer

        dec_out = h_new                                               # == dec_out[:, 0, :]
        dec_bf = dec_out.astype(jnp.bfloat16)

        enc_rows = enc_ref[0:D_PAD, :]          # (128,128) bf16 enc rows (zero-padded)
        enc_t = enc_ref[D_PAD:2 * D_PAD, :]     # (128,128) bf16 enc^T    (zero-padded)

        # ---- Luong attention (t_out == 1), contractions as plain MXU matmuls ----
        energy = jnp.dot(dec_bf, w_ref[OFF_WIN:OFF_WIN + H, :],
                         preferred_element_type=jnp.float32)          # (B, 128)
        # scores[b, c] = <energy[b], enc_flat[c]>; only the block-diagonal columns
        # (c in [b*T_in, (b+1)*T_in)) belong to batch b -> mask the rest.
        scores = jnp.dot(energy.astype(jnp.bfloat16), enc_t,
                         preferred_element_type=jnp.float32)          # (B, 128)
        srow = lax.broadcasted_iota(jnp.int32, (B, D_PAD), 0)
        scol = lax.broadcasted_iota(jnp.int32, (B, D_PAD), 1)
        own = (scol >= srow * Tc) & (scol < (srow + 1) * Tc)
        scores = jnp.where(own, scores, jnp.float32(-1e30))

        # softmax over each batch's own T_in columns (nn.Softmax() on the 2-D
        # (batch*t_out, t_in) view == softmax over t_in); masked cols underflow to 0.
        scores = scores - jnp.max(scores, axis=-1, keepdims=True)
        e = jnp.exp(scores)
        alpha = e * pl.reciprocal(jnp.sum(e, axis=-1, keepdims=True), approx=True)

        context = jnp.dot(alpha.astype(jnp.bfloat16), enc_rows,
                          preferred_element_type=jnp.float32)         # (B, 128)

        # w_out(cat([context, dec_out])) as two matmuls on the packed halves.
        pre = (jnp.dot(context.astype(jnp.bfloat16),
                       w_ref[OFF_WOUT_CTX:OFF_WOUT_CTX + D_PAD, :],
                       preferred_element_type=jnp.float32)
               + jnp.dot(dec_bf, w_ref[OFF_WOUT_DEC:OFF_WOUT_DEC + H, :],
                         preferred_element_type=jnp.float32)
               + biases[L:L + 1, :])
        attn_h = jnp.tanh(pre)                     # (B, 128); cols >= H are exactly 0

        # ---- output projection; w_lin rows zero-padded to 128 -> no lane slice,
        #      and the (B, 128) store is a full unmasked lane-dense vst.
        out_ref[...] = (jnp.dot(attn_h.astype(jnp.bfloat16),
                                w_ref[OFF_WLIN:OFF_WLIN + D_PAD, :],
                                preferred_element_type=jnp.float32)
                        + biases[L + 1:L + 2, :])

    return kernel


# ------------------------- parameter init + packing --------------------------
def init_params(key):
    keys = iter(jax.random.split(key, 16))

    def uniform(shape, scale):
        return jax.random.uniform(next(keys), shape, jnp.float32, -scale, scale)

    embed_table = 0.1 * jax.random.normal(next(keys), (V, E), jnp.float32)

    s = 1.0 / (H ** 0.5)
    lstm, blocks, bias_rows = [], [], []
    for l in range(L):
        in_dim = E if l == 0 else H
        w_ih_t = uniform((in_dim, 4 * H), s)     # PyTorch weight_ih_l{k}.T, gates [i,f,g,o]
        w_hh_t = uniform((H, 4 * H), s)          # PyTorch weight_hh_l{k}.T
        b = uniform((1, 4 * H), s) + uniform((1, 4 * H), s)      # b_ih + b_hh pre-summed
        lstm.append((w_ih_t, w_hh_t, b))
        blocks.append(jnp.pad(w_ih_t, ((0, IN_PAD - in_dim), (0, 0))))   # (IN_PAD, 128)
        blocks.append(w_hh_t)                                            # (H, 128)
        bias_rows.append(b)

    s_out = 1.0 / ((D_ENC + H) ** 0.5)
    w_in_t = uniform((H, D_ENC), s)              # attention.w_in.weight.T (no bias)
    w_out_t = uniform((D_ENC + H, H), s_out)     # attention.w_out.weight.T ([context; dec_out])
    b_out = uniform((1, H), s_out)
    w_lin_t = uniform((H, V), s)                 # out_lin.weight.T
    b_lin = uniform((1, V), s)

    blocks.append(jnp.pad(w_in_t, ((0, 0), (0, D_PAD - D_ENC))))                       # rows 128..159
    blocks.append(jnp.pad(w_out_t[:D_ENC], ((0, D_PAD - D_ENC), (0, D_PAD - H))))      # rows 160..287
    blocks.append(jnp.pad(w_out_t[D_ENC:], ((0, 0), (0, D_PAD - H))))                  # rows 288..319
    blocks.append(jnp.pad(w_lin_t, ((0, D_PAD - H), (0, D_PAD - V))))                  # rows 320..447
    bias_rows.append(jnp.pad(b_out, ((0, 0), (0, D_PAD - H))))
    bias_rows.append(jnp.pad(b_lin, ((0, 0), (0, D_PAD - V))))
    blocks.append(jnp.concatenate(bias_rows, axis=0))                                  # rows 448..451

    w_all = jnp.concatenate(blocks, axis=0)
    w_all = jnp.pad(w_all, ((0, W_ROWS - w_all.shape[0]), (0, 0)))
    assert w_all.shape == (W_ROWS, D_PAD)

    params = {
        "embed_table": jnp.pad(embed_table, ((0, 0), (0, IN_PAD - E))),   # (V, 32) f32
        "w_all": w_all.astype(jnp.bfloat16),      # single bf16 slab: weights + biases
    }
    raw = {"embed": embed_table, "lstm": lstm, "w_in": w_in_t,
           "w_out": w_out_t, "b_out": b_out, "w_lin": w_lin_t, "b_lin": b_lin}
    return params, raw


# ------------------------------- wrappers -------------------------------------
def _pack_enc(enc_out):
    """(B, T_in, D_enc) -> (2*D_PAD, D_PAD) bf16 slab [enc rows ; enc^T], zero-padded.
    Keeping both layouts resident avoids any in-kernel transpose; it is constant
    across decode steps so it is packed once per call and DMA'd once."""
    bt = B * enc_out.shape[1]
    flat = enc_out.reshape(bt, D_ENC).astype(jnp.float32)
    enc_rows = jnp.zeros((D_PAD, D_PAD), jnp.float32).at[:bt, :D_ENC].set(flat)
    enc_t = jnp.zeros((D_PAD, D_PAD), jnp.float32).at[:D_ENC, :bt].set(flat.T)
    return jnp.concatenate([enc_rows, enc_t], axis=0).astype(jnp.bfloat16)


def _run_decoder(params, tokens_flat, hc, enc_pack, t_in):
    steps = tokens_flat.shape[0] // B
    grid_spec = pltpu.PrefetchScalarGridSpec(
        num_scalar_prefetch=1,              # token ids -> SMEM
        grid=(steps,),                      # one grid iteration per decode step
        in_specs=[
            # Constant block index => each input is DMA'd into VMEM exactly once
            # and stays resident for every decode step.
            pl.BlockSpec((V, IN_PAD), lambda s, tok: (0, 0)),            # embed table (f32)
            pl.BlockSpec((2, L, B, H), lambda s, tok: (0, 0, 0, 0)),     # packed (h0, c0)
            pl.BlockSpec((2 * D_PAD, D_PAD), lambda s, tok: (0, 0)),     # packed enc (bf16)
            pl.BlockSpec((W_ROWS, D_PAD), lambda s, tok: (0, 0)),        # weights+biases (bf16)
        ],
        out_specs=pl.BlockSpec((None, B, D_PAD), lambda s, tok: (s, 0, 0)),
        scratch_shapes=[pltpu.VMEM((B, LSTM_BLOCK), jnp.float32)],       # [x | h] staging
    )
    return pl.pallas_call(
        make_decoder_kernel(t_in),
        grid_spec=grid_spec,
        out_shape=jax.ShapeDtypeStruct((steps, B, D_PAD), jnp.float32),
        # Steps are independent (forward returns the ORIGINAL hidden, so every
        # step sees the same initial state) -> "parallel" lets v7x's two
        # TensorCores split the decode steps.
        compiler_params=pltpu.CompilerParams(dimension_semantics=("parallel",)),
    )(tokens_flat, params["embed_table"], hc, enc_pack, params["w_all"])


@jax.jit
def decoder_forward(params, token_ids, hidden, enc_out):
    """Single decode step == PyTorch Decoder.forward(input, hidden, enc_out).
    Returns (logits (B, 1, V), hidden) with hidden passed through unchanged."""
    h0, c0 = hidden
    hc = jnp.stack([h0, c0], axis=0).astype(jnp.float32)          # (2, L, B, H)
    enc_pack = _pack_enc(enc_out)
    out = _run_decoder(params, token_ids.reshape(-1).astype(jnp.int32),
                       hc, enc_pack, enc_out.shape[1])
    logits = out[0, :, :V][:, None, :]                            # (B, 1, V)
    return logits, hidden


@jax.jit
def decoder_decode(params, token_seq, hidden, enc_out):
    """Fused multi-step decode: one pallas_call for all steps; weights / enc /
    state DMA'd once.  Faithful to the module: every step reuses the SAME
    initial hidden (forward returns `hidden`, not `dec_hid`)."""
    h0, c0 = hidden
    hc = jnp.stack([h0, c0], axis=0).astype(jnp.float32)
    enc_pack = _pack_enc(enc_out)
    out = _run_decoder(params, token_seq.reshape(-1).astype(jnp.int32),
                       hc, enc_pack, enc_out.shape[1])
    return out[:, :, :V], hidden                                  # (steps, B, V)


# --------------------------- pure-JAX f32 reference ---------------------------
def reference_forward(raw, token_ids, hidden, enc_out):
    h0, c0 = hidden
    x = raw["embed"][token_ids]                                   # (B, E)
    for l in range(L):
        w_ih_t, w_hh_t, b = raw["lstm"][l]
        gates = x @ w_ih_t + h0[l] @ w_hh_t + b
        i = jax.nn.sigmoid(gates[:, 0 * H:1 * H])
        f = jax.nn.sigmoid(gates[:, 1 * H:2 * H])
        g = jnp.tanh(gates[:, 2 * H:3 * H])
        o = jax.nn.sigmoid(gates[:, 3 * H:4 * H])
        c = f * c0[l] + i * g
        x = o * jnp.tanh(c)
    dec_out = x                                                   # (B, H)
    energy = dec_out @ raw["w_in"]                                # (B, D_enc)
    scores = jnp.einsum("bd,btd->bt", energy, enc_out)
    alpha = jax.nn.softmax(scores, axis=-1)
    context = jnp.einsum("bt,btd->bd", alpha, enc_out)
    attn_h = jnp.tanh(jnp.concatenate([context, dec_out], -1) @ raw["w_out"] + raw["b_out"])
    return attn_h @ raw["w_lin"] + raw["b_lin"]                   # (B, V)


# --------------------------------- main ---------------------------------------
if __name__ == "__main__":
    key = jax.random.PRNGKey(0)
    pkey, k1, k2, k3, k4, k5 = jax.random.split(key, 6)
    params, raw = init_params(pkey)

    token_ids = jax.random.randint(k1, (B,), 0, V, dtype=jnp.int32)
    h0 = 0.1 * jax.random.normal(k2, (L, B, H), jnp.float32)
    c0 = 0.1 * jax.random.normal(k3, (L, B, H), jnp.float32)
    enc_out = 0.1 * jax.random.normal(k4, (B, T_IN, D_ENC), jnp.float32)

    # --- single decode step: exactly the PyTorch Decoder.forward ---
    logits, hidden_out = decoder_forward(params, token_ids, (h0, c0), enc_out)
    logits = jax.block_until_ready(logits)
    assert logits.shape == (B, 1, V)
    assert hidden_out[0].shape == (L, B, H) and hidden_out[1].shape == (L, B, H)
    assert bool(jnp.all(jnp.isfinite(logits)))

    # --- numerics vs. pure-JAX f32 reference (bf16 weights -> loose tolerance) ---
    ref = reference_forward(raw, token_ids, (h0, c0), enc_out)
    max_err = float(jnp.max(jnp.abs(logits[:, 0, :] - ref)))
    assert bool(jnp.allclose(logits[:, 0, :], ref, atol=3e-2, rtol=3e-2)), max_err

    # --- fused multi-step decode: one pallas_call for the whole token sequence ---
    steps = 6
    token_seq = jax.random.randint(k5, (steps, B), 0, V, dtype=jnp.int32)
    seq_logits, _ = decoder_decode(params, token_seq, (h0, c0), enc_out)
    seq_logits = jax.block_until_ready(seq_logits)
    assert seq_logits.shape == (steps, B, V)
    assert bool(jnp.all(jnp.isfinite(seq_logits)))
    step0, _ = decoder_forward(params, token_seq[0], (h0, c0), enc_out)
    assert bool(jnp.allclose(seq_logits[0], step0[:, 0, :], atol=1e-5, rtol=1e-5))

    print("KERNEL_OK")
</pallas_src>

<mosaic_0001>
module attributes {stable_mosaic.version = 11 : i64} {
  func.func @kernel(%arg0: i32, %arg1: memref<2xi32, #tpu.memory_space<smem>>, %arg2: memref<64x32xf32, #tpu.memory_space<vmem>>, %arg3: memref<2x2x2x32xf32, #tpu.memory_space<vmem>>, %arg4: memref<256x128xbf16, #tpu.memory_space<vmem>>, %arg5: memref<464x128xbf16, #tpu.memory_space<vmem>>, %arg6: memref<1x2x128xf32, #tpu.memory_space<vmem>>, %arg7: memref<2x64xf32, #tpu.memory_space<vmem>>) attributes {dimension_semantics = [#tpu.dimension_semantics<parallel>], iteration_bounds = array<i64: 1>, scalar_prefetch = 1 : i64, scratch_operands = 1 : i64, tpu.core_type = #tpu.core_type<tc>, window_params = [{pipeline_mode = #tpu.pipeline_mode<synchronous>, transform_indices = @transform_0, window_bounds = array<i64: 64, 32>}, {pipeline_mode = #tpu.pipeline_mode<synchronous>, transform_indices = @transform_1, window_bounds = array<i64: 2, 2, 2, 32>}, {pipeline_mode = #tpu.pipeline_mode<synchronous>, transform_indices = @transform_2, window_bounds = array<i64: 256, 128>}, {pipeline_mode = #tpu.pipeline_mode<synchronous>, transform_indices = @transform_3, window_bounds = array<i64: 464, 128>}, {transform_indices = @transform_4, window_bounds = array<i64: 1, 2, 128>}]} {
    %0 = tpu.iota {dimensions = array<i32: 0>} : vector<2x64xi32>
    %1 = tpu.iota {dimensions = array<i32: 1>} : vector<2x64xi32>
    %cst = arith.constant 0.000000e+00 : f32
    %2 = vector.broadcast %cst : f32 to vector<2x64xf32>
    %c2_i32 = arith.constant 2 : i32
    %3 = arith.muli %arg0, %c2_i32 : i32
    %c0_i32 = arith.constant 0 : i32
    %4 = arith.addi %3, %c0_i32 : i32
    %5 = arith.index_cast %4 : i32 to index
    %6 = memref.load %arg1[%5] : memref<2xi32, #tpu.memory_space<smem>>
    %c0_i32_0 = arith.constant 0 : i32
    %7 = vector.broadcast %c0_i32_0 : i32 to vector<2x64xi32>
    %8 = arith.cmpi eq, %0, %7 : vector<2x64xi32>
    %9 = vector.broadcast %6 : i32 to vector<2x64xi32>
    %10 = arith.cmpi eq, %1, %9 : vector<2x64xi32>
    %11 = arith.andi %8, %10 : vector<2x64xi1>
    %cst_1 = arith.constant 1.000000e+00 : f32
    %12 = vector.broadcast %cst_1 : f32 to vector<2x64xf32>
    %13 = arith.select %11, %12, %2 : vector<2x64xi1>, vector<2x64xf32>
    %c2_i32_2 = arith.constant 2 : i32
    %14 = arith.muli %arg0, %c2_i32_2 : i32
    %c1_i32 = arith.constant 1 : i32
    %15 = arith.addi %14, %c1_i32 : i32
    %16 = arith.index_cast %15 : i32 to index
    %17 = memref.load %arg1[%16] : memref<2xi32, #tpu.memory_space<smem>>
    %c1_i32_3 = arith.constant 1 : i32
    %18 = vector.broadcast %c1_i32_3 : i32 to vector<2x64xi32>
    %19 = arith.cmpi eq, %0, %18 : vector<2x64xi32>
    %20 = vector.broadcast %17 : i32 to vector<2x64xi32>
    %21 = arith.cmpi eq, %1, %20 : vector<2x64xi32>
    %22 = arith.andi %19, %21 : vector<2x64xi1>
    %cst_4 = arith.constant 1.000000e+00 : f32
    %23 = vector.broadcast %cst_4 : f32 to vector<2x64xf32>
    %24 = arith.select %22, %23, %13 : vector<2x64xi1>, vector<2x64xf32>
    %c0 = arith.constant 0 : index
    %c0_5 = arith.constant 0 : index
    %25 = vector.load %arg2[%c0, %c0_5] : memref<64x32xf32, #tpu.memory_space<vmem>>, vector<64x32xf32>
    %cst_6 = arith.constant dense<0.000000e+00> : vector<2x32xf32>
    %26 = tpu.matmul %24, %25, %cst_6 {dimension_numbers = #tpu.dot_dimension_numbers<[1], [0], [0], [1], [0, 0, 1, 1], [], []>} : vector<2x64xf32>, vector<64x32xf32>, vector<2x32xf32> -> vector<2x32xf32>
    %c0_7 = arith.constant 0 : index
    %c0_8 = arith.constant 0 : index
    %27 = vector.load %arg7[%c0_7, %c0_8] : memref<2x64xf32, #tpu.memory_space<vmem>>, vector<2x32xf32>
    tpu.vector_store %arg7[%c0_7, %c0_8], %26 {strides = array<i32>} : memref<2x64xf32, #tpu.memory_space<vmem>>, vector<2x32xf32>,
    %c448 = arith.constant 448 : index
    %c0_9 = arith.constant 0 : index
    %28 = vector.load %arg5[%c448, %c0_9] : memref<464x128xbf16, #tpu.memory_space<vmem>>, vector<8x128xbf16>
    %29 = arith.extf %28 : vector<8x128xbf16> to vector<8x128xf32>
    %c0_10 = arith.constant 0 : index
    %c0_11 = arith.constant 0 : index
    %c0_12 = arith.constant 0 : index
    %c0_13 = arith.constant 0 : index
    %30 = vector.load %arg3[%c0_10, %c0_11, %c0_12, %c0_13] : memref<2x2x2x32xf32, #tpu.memory_space<vmem>>, vector<1x1x2x32xf32>
    %31 = vector.shape_cast %30 : vector<1x1x2x32xf32> to vector<2x32xf32>
    %c0_14 = arith.constant 0 : index
    %c32 = arith.constant 32 : index
    %32 = vector.load %arg7[%c0_14, %c32] : memref<2x64xf32, #tpu.memory_space<vmem>>, vector<2x32xf32>
    tpu.vector_store %arg7[%c0_14, %c32], %31 {strides = array<i32>} : memref<2x64xf32, #tpu.memory_space<vmem>>, vector<2x32xf32>,
    %c0_15 = arith.constant 0 : index
    %c0_16 = arith.constant 0 : index
    %33 = vector.load %arg7[%c0_15, %c0_16] : memref<2x64xf32, #tpu.memory_space<vmem>>, vector<2x64xf32>
    %34 = arith.truncf %33 : vector<2x64xf32> to vector<2x64xbf16>
    %c0_17 = arith.constant 0 : index
    %c0_18 = arith.constant 0 : index
    %35 = vector.load %arg5[%c0_17, %c0_18] : memref<464x128xbf16, #tpu.memory_space<vmem>>, vector<64x128xbf16>
    %cst_19 = arith.constant dense<0.000000e+00> : vector<2x128xf32>
    %36 = tpu.matmul %34, %35, %cst_19 {dimension_numbers = #tpu.dot_dimension_numbers<[1], [0], [0], [1], [0, 0, 1, 1], [], []>} : vector<2x64xbf16>, vector<64x128xbf16>, vector<2x128xf32> -> vector<2x128xf32>
    %37 = vector.extract_strided_slice %29 {offsets = [0, 0], sizes = [1, 128], strides = [1, 1]} : vector<8x128xf32> to vector<1x128xf32>
    %38 = vector.broadcast %37 : vector<1x128xf32> to vector<2x128xf32>
    %39 = arith.addf %36, %38 : vector<2x128xf32>
    %cst_20 = arith.constant 0.000000e+00 : f32
    %40 = vector.broadcast %cst_20 : f32 to vector<2x128xf32>
    %41 = arith.subf %40, %39 : vector<2x128xf32>
    %42 = math.exp %41 : vector<2x128xf32>
    %cst_21 = arith.constant 1.000000e+00 : f32
    %43 = vector.broadcast %cst_21 : f32 to vector<2x128xf32>
    %44 = arith.addf %43, %42 : vector<2x128xf32>
    %cst_22 = arith.constant 1.000000e+00 : f32
    %45 = vector.broadcast %cst_22 : f32 to vector<2x128xf32>
    %46 = arith.divf %45, %44 : vector<2x128xf32>
    %47 = vector.extract_strided_slice %46 {offsets = [0, 0], sizes = [2, 32], strides = [1, 1]} : vector<2x128xf32> to vector<2x32xf32>
    %48 = vector.extract_strided_slice %46 {offsets = [0, 32], sizes = [2, 32], strides = [1, 1]} : vector<2x128xf32> to vector<2x32xf32>
    %49 = vector.extract_strided_slice %46 {offsets = [0, 96], sizes = [2, 32], strides = [1, 1]} : vector<2x128xf32> to vector<2x32xf32>
    %50 = vector.extract_strided_slice %39 {offsets = [0, 64], sizes = [2, 32], strides = [1, 1]} : vector<2x128xf32> to vector<2x32xf32>
    %51 = math.tanh %50 : vector<2x32xf32>
    %c1 = arith.constant 1 : index
    %c0_23 = arith.constant 0 : index
    %c0_24 = arith.constant 0 : index
    %c0_25 = arith.constant 0 : index
    %52 = vector.load %arg3[%c1, %c0_23, %c0_24, %c0_25] : memref<2x2x2x32xf32, #tpu.memory_space<vmem>>, vector<1x1x2x32xf32>
    %53 = vector.shape_cast %52 : vector<1x1x2x32xf32> to vector<2x32xf32>
    %54 = arith.mulf %48, %53 : vector<2x32xf32>
    %55 = arith.mulf %47, %51 : vector<2x32xf32>
    %56 = arith.addf %54, %55 : vector<2x32xf32>
    %57 = math.tanh %56 : vector<2x32xf32>
    %58 = arith.mulf %49, %57 : vector<2x32xf32>
    %c0_26 = arith.constant 0 : index
    %c0_27 = arith.constant 0 : index
    %59 = vector.load %arg7[%c0_26, %c0_27] : memref<2x64xf32, #tpu.memory_space<vmem>>, vector<2x32xf32>
    tpu.vector_store %arg7[%c0_26, %c0_27], %58 {strides = array<i32>} : memref<2x64xf32, #tpu.memory_space<vmem>>, vector<2x32xf32>,
    %c0_28 = arith.constant 0 : index
    %c1_29 = arith.constant 1 : index
    %c0_30 = arith.constant 0 : index
    %c0_31 = arith.constant 0 : index
    %60 = vector.load %arg3[%c0_28, %c1_29, %c0_30, %c0_31] : memref<2x2x2x32xf32, #tpu.memory_space<vmem>>, vector<1x1x2x32xf32>
    %61 = vector.shape_cast %60 : vector<1x1x2x32xf32> to vector<2x32xf32>
    %c0_32 = arith.constant 0 : index
    %c32_33 = arith.constant 32 : index
    %62 = vector.load %arg7[%c0_32, %c32_33] : memref<2x64xf32, #tpu.memory_space<vmem>>, vector<2x32xf32>
    tpu.vector_store %arg7[%c0_32, %c32_33], %61 {strides = array<i32>} : memref<2x64xf32, #tpu.memory_space<vmem>>, vector<2x32xf32>,
    %c0_34 = arith.constant 0 : index
    %c0_35 = arith.constant 0 : index
    %63 = vector.load %arg7[%c0_34, %c0_35] : memref<2x64xf32, #tpu.memory_space<vmem>>, vector<2x64xf32>
    %64 = arith.truncf %63 : vector<2x64xf32> to vector<2x64xbf16>
    %c64 = arith.constant 64 : index
    %c0_36 = arith.constant 0 : index
    %65 = vector.load %arg5[%c64, %c0_36] : memref<464x128xbf16, #tpu.memory_space<vmem>>, vector<64x128xbf16>
    %cst_37 = arith.constant dense<0.000000e+00> : vector<2x128xf32>
    %66 = tpu.matmul %64, %65, %cst_37 {dimension_numbers = #tpu.dot_dimension_numbers<[1], [0], [0], [1], [0, 0, 1, 1], [], []>} : vector<2x64xbf16>, vector<64x128xbf16>, vector<2x128xf32> -> vector<2x128xf32>
    %67 = vector.extract_strided_slice %29 {offsets = [1, 0], sizes = [1, 128], strides = [1, 1]} : vector<8x128xf32> to vector<1x128xf32>
    %68 = vector.broadcast %67 : vector<1x128xf32> to vector<2x128xf32>
    %69 = arith.addf %66, %68 : vector<2x128xf32>
    %cst_38 = arith.constant 0.000000e+00 : f32
    %70 = vector.broadcast %cst_38 : f32 to vector<2x128xf32>
    %71 = arith.subf %70, %69 : vector<2x128xf32>
    %72 = math.exp %71 : vector<2x128xf32>
    %cst_39 = arith.constant 1.000000e+00 : f32
    %73 = vector.broadcast %cst_39 : f32 to vector<2x128xf32>
    %74 = arith.addf %73, %72 : vector<2x128xf32>
    %cst_40 = arith.constant 1.000000e+00 : f32
    %75 = vector.broadcast %cst_40 : f32 to vector<2x128xf32>
    %76 = arith.divf %75, %74 : vector<2x128xf32>
    %77 = vector.extract_strided_slice %76 {offsets = [0, 0], sizes = [2, 32], strides = [1, 1]} : vector<2x128xf32> to vector<2x32xf32>
    %78 = vector.extract_strided_slice %76 {offsets = [0, 32], sizes = [2, 32], strides = [1, 1]} : vector<2x128xf32> to vector<2x32xf32>
    %79 = vector.extract_strided_slice %76 {offsets = [0, 96], sizes = [2, 32], strides = [1, 1]} : vector<2x128xf32> to vector<2x32xf32>
    %80 = vector.extract_strided_slice %69 {offsets = [0, 64], sizes = [2, 32], strides = [1, 1]} : vector<2x128xf32> to vector<2x32xf32>
    %81 = math.tanh %80 : vector<2x32xf32>
    %c1_41 = arith.constant 1 : index
    %c1_42 = arith.constant 1 : index
    %c0_43 = arith.constant 0 : index
    %c0_44 = arith.constant 0 : index
    %82 = vector.load %arg3[%c1_41, %c1_42, %c0_43, %c0_44] : memref<2x2x2x32xf32, #tpu.memory_space<vmem>>, vector<1x1x2x32xf32>
    %83 = vector.shape_cast %82 : vector<1x1x2x32xf32> to vector<2x32xf32>
    %84 = arith.mulf %78, %83 : vector<2x32xf32>
    %85 = arith.mulf %77, %81 : vector<2x32xf32>
    %86 = arith.addf %84, %85 : vector<2x32xf32>
    %87 = math.tanh %86 : vector<2x32xf32>
    %88 = arith.mulf %79, %87 : vector<2x32xf32>
    %89 = arith.truncf %88 : vector<2x32xf32> to vector<2x32xbf16>
    %c0_45 = arith.constant 0 : index
    %c0_46 = arith.constant 0 : index
    %90 = vector.load %arg4[%c0_45, %c0_46] : memref<256x128xbf16, #tpu.memory_space<vmem>>, vector<128x128xbf16>
    %c128 = arith.constant 128 : index
    %c0_47 = arith.constant 0 : index
    %91 = vector.load %arg4[%c128, %c0_47] : memref<256x128xbf16, #tpu.memory_space<vmem>>, vector<128x128xbf16>
    %c128_48 = arith.constant 128 : index
    %c0_49 = arith.constant 0 : index
    %92 = vector.load %arg5[%c128_48, %c0_49] : memref<464x128xbf16, #tpu.memory_space<vmem>>, vector<32x128xbf16>
    %cst_50 = arith.constant dense<0.000000e+00> : vector<2x128xf32>
    %93 = tpu.matmul %89, %92, %cst_50 {dimension_numbers = #tpu.dot_dimension_numbers<[1], [0], [0], [1], [0, 0, 1, 1], [], []>} : vector<2x32xbf16>, vector<32x128xbf16>, vector<2x128xf32> -> vector<2x128xf32>
    %94 = arith.truncf %93 : vector<2x128xf32> to vector<2x128xbf16>
    %cst_51 = arith.constant dense<0.000000e+00> : vector<2x128xf32>
    %95 = tpu.matmul %94, %91, %cst_51 {dimension_numbers = #tpu.dot_dimension_numbers<[1], [0], [0], [1], [0, 0, 1, 1], [], []>} : vector<2x128xbf16>, vector<128x128xbf16>, vector<2x128xf32> -> vector<2x128xf32>
    %96 = tpu.iota {dimensions = array<i32: 0>} : vector<2x128xi32>
    %97 = tpu.iota {dimensions = array<i32: 1>} : vector<2x128xi32>
    %c8_i32 = arith.constant 8 : i32
    %98 = vector.broadcast %c8_i32 : i32 to vector<2x128xi32>
    %99 = arith.muli %96, %98 : vector<2x128xi32>
    %100 = arith.cmpi sge, %97, %99 : vector<2x128xi32>
    %c1_i32_52 = arith.constant 1 : i32
    %101 = vector.broadcast %c1_i32_52 : i32 to vector<2x128xi32>
    %102 = arith.addi %96, %101 : vector<2x128xi32>
    %c8_i32_53 = arith.constant 8 : i32
    %103 = vector.broadcast %c8_i32_53 : i32 to vector<2x128xi32>
    %104 = arith.muli %102, %103 : vector<2x128xi32>
    %105 = arith.cmpi slt, %97, %104 : vector<2x128xi32>
    %106 = arith.andi %100, %105 : vector<2x128xi1>
    %cst_54 = arith.constant -1.000000e+30 : f32
    %107 = vector.broadcast %cst_54 : f32 to vector<2x128xf32>
    %108 = arith.select %106, %95, %107 : vector<2x128xi1>, vector<2x128xf32>
    %cst_55 = arith.constant dense<0xFF800000> : vector<2xf32>
    %109 = vector.multi_reduction <maximumf>, %108, %cst_55 [1] : vector<2x128xf32> to vector<2xf32>
    %110 = vector.shape_cast %109 : vector<2xf32> to vector<2x1xf32>
    %111 = vector.broadcast %110 : vector<2x1xf32> to vector<2x128xf32>
    %112 = arith.subf %108, %111 : vector<2x128xf32>
    %113 = math.exp %112 : vector<2x128xf32>
    %cst_56 = arith.constant dense<0.000000e+00> : vector<2xf32>
    %114 = vector.multi_reduction <add>, %113, %cst_56 [1] : vector<2x128xf32> to vector<2xf32>
    %115 = vector.shape_cast %114 : vector<2xf32> to vector<2x1xf32>
    %116 = tpu.reciprocal %115 {approx = true} : vector<2x1xf32> -> vector<2x1xf32>
    %117 = vector.broadcast %116 : vector<2x1xf32> to vector<2x128xf32>
    %118 = arith.mulf %113, %117 : vector<2x128xf32>
    %119 = arith.truncf %118 : vector<2x128xf32> to vector<2x128xbf16>
    %cst_57 = arith.constant dense<0.000000e+00> : vector<2x128xf32>
    %120 = tpu.matmul %119, %90, %cst_57 {dimension_numbers = #tpu.dot_dimension_numbers<[1], [0], [0], [1], [0, 0, 1, 1], [], []>} : vector<2x128xbf16>, vector<128x128xbf16>, vector<2x128xf32> -> vector<2x128xf32>
    %121 = arith.truncf %120 : vector<2x128xf32> to vector<2x128xbf16>
    %c160 = arith.constant 160 : index
    %c0_58 = arith.constant 0 : index
    %122 = vector.load %arg5[%c160, %c0_58] : memref<464x128xbf16, #tpu.memory_space<vmem>>, vector<128x128xbf16>
    %cst_59 = arith.constant dense<0.000000e+00> : vector<2x128xf32>
    %123 = tpu.matmul %121, %122, %cst_59 {dimension_numbers = #tpu.dot_dimension_numbers<[1], [0], [0], [1], [0, 0, 1, 1], [], []>} : vector<2x128xbf16>, vector<128x128xbf16>, vector<2x128xf32> -> vector<2x128xf32>
    %c288 = arith.constant 288 : index
    %c0_60 = arith.constant 0 : index
    %124 = vector.load %arg5[%c288, %c0_60] : memref<464x128xbf16, #tpu.memory_space<vmem>>, vector<32x128xbf16>
    %cst_61 = arith.constant dense<0.000000e+00> : vector<2x128xf32>
    %125 = tpu.matmul %89, %124, %cst_61 {dimension_numbers = #tpu.dot_dimension_numbers<[1], [0], [0], [1], [0, 0, 1, 1], [], []>} : vector<2x32xbf16>, vector<32x128xbf16>, vector<2x128xf32> -> vector<2x128xf32>
    %126 = arith.addf %123, %125 : vector<2x128xf32>
    %127 = vector.extract_strided_slice %29 {offsets = [2, 0], sizes = [1, 128], strides = [1, 1]} : vector<8x128xf32> to vector<1x128xf32>
    %128 = vector.broadcast %127 : vector<1x128xf32> to vector<2x128xf32>
    %129 = arith.addf %126, %128 : vector<2x128xf32>
    %130 = math.tanh %129 : vector<2x128xf32>
    %131 = arith.truncf %130 : vector<2x128xf32> to vector<2x128xbf16>
    %c320 = arith.constant 320 : index
    %c0_62 = arith.constant 0 : index
    %132 = vector.load %arg5[%c320, %c0_62] : memref<464x128xbf16, #tpu.memory_space<vmem>>, vector<128x128xbf16>
    %cst_63 = arith.constant dense<0.000000e+00> : vector<2x128xf32>
    %133 = tpu.matmul %131, %132, %cst_63 {dimension_numbers = #tpu.dot_dimension_numbers<[1], [0], [0], [1], [0, 0, 1, 1], [], []>} : vector<2x128xbf16>, vector<128x128xbf16>, vector<2x128xf32> -> vector<2x128xf32>
    %134 = vector.extract_strided_slice %29 {offsets = [3, 0], sizes = [1, 128], strides = [1, 1]} : vector<8x128xf32> to vector<1x128xf32>
    %135 = vector.broadcast %134 : vector<1x128xf32> to vector<2x128xf32>
    %136 = arith.addf %133, %135 : vector<2x128xf32>
    %c0_64 = arith.constant 0 : index
    %c0_65 = arith.constant 0 : index
    %c0_66 = arith.constant 0 : index
    %137 = vector.load %arg6[%c0_64, %c0_65, %c0_66] : memref<1x2x128xf32, #tpu.memory_space<vmem>>, vector<1x2x128xf32>
    %138 = vector.shape_cast %137 : vector<1x2x128xf32> to vector<2x128xf32>
    %139 = vector.shape_cast %136 : vector<2x128xf32> to vector<1x2x128xf32>
    tpu.vector_store %arg6[%c0_64, %c0_65, %c0_66], %139 {strides = array<i32>} : memref<1x2x128xf32, #tpu.memory_space<vmem>>, vector<1x2x128xf32>,
    return
  }
  func.func @transform_0(%arg0: i32, %arg1: memref<2xi32, #tpu.memory_space<smem>>) -> (i32, i32) {
    %c0_i32 = arith.constant 0 : i32
    %c0_i32_0 = arith.constant 0 : i32
    %c0_i32_1 = arith.constant 0 : i32
    return %c0_i32, %c0_i32_0 : i32, i32
  }
  func.func @transform_1(%arg0: i32, %arg1: memref<2xi32, #tpu.memory_space<smem>>) -> (i32, i32, i32, i32) {
    %c0_i32 = arith.constant 0 : i32
    %c0_i32_0 = arith.constant 0 : i32
    %c0_i32_1 = arith.constant 0 : i32
    %c0_i32_2 = arith.constant 0 : i32
    %c0_i32_3 = arith.constant 0 : i32
    return %c0_i32, %c0_i32_0, %c0_i32_1, %c0_i32_2 : i32, i32, i32, i32
  }
  func.func @transform_2(%arg0: i32, %arg1: memref<2xi32, #tpu.memory_space<smem>>) -> (i32, i32) {
    %c0_i32 = arith.constant 0 : i32
    %c0_i32_0 = arith.constant 0 : i32
    %c0_i32_1 = arith.constant 0 : i32
    return %c0_i32, %c0_i32_0 : i32, i32
  }
  func.func @transform_3(%arg0: i32, %arg1: memref<2xi32, #tpu.memory_space<smem>>) -> (i32, i32) {
    %c0_i32 = arith.constant 0 : i32
    %c0_i32_0 = arith.constant 0 : i32
    %c0_i32_1 = arith.constant 0 : i32
    return %c0_i32, %c0_i32_0 : i32, i32
  }
  func.func @transform_4(%arg0: i32, %arg1: memref<2xi32, #tpu.memory_space<smem>>) -> (i32, i32, i32) {
    %c0_i32 = arith.constant 0 : i32
    %c0_i32_0 = arith.constant 0 : i32
    %c0_i32_1 = arith.constant 0 : i32
    return %arg0, %c0_i32, %c0_i32_0 : i32, i32, i32
  }
}

</mosaic_0001>

<llo_original>
// kernel: decoder_forward.1
$region0: #{decoder_forward.1}
  #allocation0 [shape = 'u32[]', space=smem, size = 0x4, offset = 0x4, fixed_abs, tag = 'smem constant byte address 0x4 - core index']
  #allocation1 [shape = 'u32[144,128]{1,0:T(1,128)}', space=vmem, size = 0x12000, scoped, tag = 'internal scratch']
  #allocation2 [shape = 'f32[2,64]{1,0:T(2,128)}', space=vmem, size = 0x400, scoped, tag = 'scratch operand']
  #allocation3 [shape = 's32[1]{0}', space=sflag, size = 0x4, scoped, tag = 'scoped memory for decoder_forward.1']
  #allocation4 [shape = 'u8[512]{0}', space=smem, size = 0x200, scoped, tag = 'prefetched SMEM operand 0']
  %s0 = inlined_call_operand.vmem [shape: s32[2], index: 0, kind: input, shape index: {}]
  %s1 = inlined_call_operand.vmem [shape: f32[64,32], index: 1, kind: input, shape index: {}]
  %s2 = inlined_call_operand.vmem [shape: f32[2,2,2,32], index: 2, kind: input, shape index: {}]
  %s3 = inlined_call_operand.vmem [shape: bf16[256,128], index: 3, kind: input, shape index: {}]
  %s4 = inlined_call_operand.vmem [shape: bf16[464,128], index: 4, kind: input, shape index: {}]
  %s5 = inlined_call_operand.hbm [shape: f32[1,2,128], index: 5, kind: output, shape index: {}]
  %s6 = sld [smem:[#allocation0]]
  $region26: #{decoder_forward.1} parent=0
    _
  %s8 = ssub.s32 1, %s6
  %s9 = scalar_select 0, %s8, %s6
  %s10 = sshll.u32 %s0, 4
  %s11 = int_to_ptr.vmem [resolvable:$true] %s10
  %13 = dma.vmem_to_smem %s11, 16, [#allocation4], [#allocation3]
  %14 = dma.done [#allocation3], 16
  %15 = sfence
  $region1: #{decoder_forward.1} parent=0
    #allocation5 [shape = 'u8[1024]{0}', space=vmem, size = 0x400, scoped, tag = 'output window, operand 0, single buffered']
    #allocation6 [shape = 's32[1]{0}', space=sflag, size = 0x4, scoped, tag = 'scoped memory for decoder_forward.1']
    %16 = vsyncpa [#allocation6], 0
    // Predicated region
    $region2: #{decoder_forward.1} parent=1 // pred_check
      _
    $region3: #{decoder_forward.1} parent=1 // pred_check_branch
      %18 = sbr.rel (0) target = $region5
    $region4: #{decoder_forward.1} parent=1 // pred_region
      _
    $region5: #{decoder_forward.1} parent=1 // pred_fallthru
      _
    // Predicated region
    $region6: #{decoder_forward.1} parent=1 // pred_check
      _
    $region7: #{decoder_forward.1} parent=1 // pred_check_branch
      %20 = sbr.rel (0) target = $region9
    $region8: #{decoder_forward.1} parent=1 // pred_region
      _
    $region9: #{decoder_forward.1} parent=1 // pred_fallthru
      _
    // Predicated region
    $region10: #{decoder_forward.1} parent=1 // pred_check
      _
    $region11: #{decoder_forward.1} parent=1 // pred_check_branch
      %22 = sbr.rel (0) target = $region13
    $region12: #{decoder_forward.1} parent=1 // pred_region
      _
    $region13: #{decoder_forward.1} parent=1 // pred_fallthru
      _
    // Predicated region
    $region14: #{decoder_forward.1} parent=1 // pred_check
      _
    $region15: #{decoder_forward.1} parent=1 // pred_check_branch
      %24 = sbr.rel (0) target = $region17
    $region16: #{decoder_forward.1} parent=1 // pred_region
      _
    $region17: #{decoder_forward.1} parent=1 // pred_fallthru
      _
    %v26 = vlaneseq
    %v27 = vshrl.u32 %v26, 7
    %v28 = vlaneseq
    %v29 = vand.u32 %v28, 127
    %s30 = smul.u32 0, 2
    %s31 = sld [smem:[#allocation4 + %s30]]
    %vm32 = vcmp.eq.s32.totalorder %v27, 0
    %v33 = vstv %s31
    %vm34 = vcmp.eq.s32.totalorder %v29, %v33
    %vm35 = vmand %vm32, %vm34
    %v36 = vsel %vm35, 1.0, 0.0
    %s37 = sadd.s32 %s30, 1
    %s38 = sld [smem:[#allocation4 + %s37]]
    %vm39 = vcmp.eq.s32.totalorder %v27, 1
    %v40 = vstv %s38
    %vm41 = vcmp.eq.s32.totalorder %v29, %v40
    %vm42 = vmand %vm39, %vm41
    %v43 = vsel %vm42, 1.0, %v36
    %v44 = vld [vmem:[%s1] sm:$0xff]
    %v45 = vld [vmem:[%s1 + $0x8] sm:$0xff]
    %v46 = vld [vmem:[%s1 + $0x10] sm:$0xff]
    %v47 = vld [vmem:[%s1 + $0x18] sm:$0xff]
    %v48 = vld [vmem:[%s1 + $0x20] sm:$0xff]
    %v49 = vld [vmem:[%s1 + $0x28] sm:$0xff]
    %v50 = vld [vmem:[%s1 + $0x30] sm:$0xff]
    %v51 = vld [vmem:[%s1 + $0x38] sm:$0xff]
    %vm52 = vcmask 523264
    %v54 = vsel %vm52, %v43, 0
    %56 = vmatprep.subr.mxu0 0.0
    %57 = vmatpush1.msra.mxu0 0.0
    %58 = vmatprep.subr.mxu0 0.0
    %59 = vmatpush1.msra.mxu0 0.0
    %60 = vmatprep.subr.mxu0 0.0
    %61 = vmatpush1.msra.mxu0 0.0
    %62 = vmatprep.subr.mxu0 0.0
    %63 = vmatpush1.msra.mxu0 0.0
    %64 = vmatprep.subr.mxu0 0.0
    %65 = vmatpush1.msra.mxu0 0.0
    %66 = vmatprep.subr.mxu0 0.0
    %67 = vmatpush1.msra.mxu0 0.0
    %68 = vmatprep.subr.mxu0 0.0
    %69 = vmatpush1.msra.mxu0 0.0
    %70 = vmatprep.subr.mxu0 0.0
    %71 = vmatpush1.msra.mxu0 0.0
    %72 = vmatprep.subr.mxu0 0.0
    %73 = vmatpush1.msra.mxu0 %v51
    %74 = vmatprep.subr.mxu0 0.0
    %75 = vmatpush1.msra.mxu0 %v50
    %76 = vmatprep.subr.mxu0 0.0
    %77 = vmatpush1.msra.mxu0 %v49
    %78 = vmatprep.subr.mxu0 0.0
    %79 = vmatpush1.msra.mxu0 %v48
    %80 = vmatprep.subr.mxu0 0.0
    %81 = vmatpush1.msra.mxu0 %v47
    %82 = vmatprep.subr.mxu0 0.0
    %83 = vmatpush1.msra.mxu0 %v46
    %84 = vmatprep.subr.mxu0 0.0
    %85 = vmatpush1.msra.mxu0 %v45
    %86 = vmatprep.subr.mxu0 0.0
    %87 = vmatpush1.msra.mxu0 %v44
    %88 = vmatprep.subr.mxu0 0.0
    %89 = vmatpush2.msra.mxu0 0.0
    %90 = vmatprep.subr.mxu0 0.0
    %91 = vmatpush2.msra.mxu0 0.0
    %92 = vmatprep.subr.mxu0 0.0
    %93 = vmatpush2.msra.mxu0 0.0
    %94 = vmatprep.subr.mxu0 0.0
    %95 = vmatpush2.msra.mxu0 0.0
    %96 = vmatprep.subr.mxu0 0.0
    %97 = vmatpush2.msra.mxu0 0.0
    %98 = vmatprep.subr.mxu0 0.0
    %99 = vmatpush2.msra.mxu0 0.0
    %100 = vmatprep.subr.mxu0 0.0
    %101 = vmatpush2.msra.mxu0 0.0
    %102 = vmatprep.subr.mxu0 0.0
    %103 = vmatpush2.msra.mxu0 0.0
    %104 = vmatprep.subr.mxu0 0.0
    %105 = vmatpush2.msra.mxu0 0.0
    %106 = vmatprep.subr.mxu0 0.0
    %107 = vmatpush2.msra.mxu0 0.0
    %108 = vmatprep.subr.mxu0 0.0
    %109 = vmatpush2.msra.mxu0 0.0
    %110 = vmatprep.subr.mxu0 0.0
    %111 = vmatpush2.msra.mxu0 0.0
    %112 = vmatprep.subr.mxu0 0.0
    %113 = vmatpush2.msra.mxu0 0.0
    %114 = vmatprep.subr.mxu0 0.0
    %115 = vmatpush2.msra.mxu0 0.0
    %116 = vmatprep.subr.mxu0 0.0
    %117 = vmatpush2.msra.mxu0 0.0
    %118 = vmatprep.subr.mxu0 0.0
    %119 = vmatpush2.msra.mxu0 0.0
    %120 = vmatprep.mubr.f32.mxu0 0.0
    %121 = vmatmul.mubr.f32.gmra.mxu0 %v54
    %v122 = vpop.f32.mrf.mxu0
    %v123 = vadd.f32 0.0, %v122
    %v124 = vpop.f32.mrf.mxu0
    %125 = vdwg.mxu0
    %vm126 = vcmask 254976
    %127 = vst.msk [vmem:[#allocation2] sm:$0x3] %vm126, %v123
    %v128 = vld [vmem:[%s4 + $0xe0] sm:$0xf]
    %v129 = vunpack.c.l.bf16 %v128
    %v130 = vld [vmem:[%s2] sm:$0x3]
    %132 = vrot.lane.b32.xlu0 %v130, 32
    %v133 = vpop.permute.xlu0 %132
    %vm135 = vcmask 517376
    %136 = vst.msk [vmem:[#allocation2] sm:$0x3] %vm135, %v133
    %v137 = vld [vmem:[#allocation2] sm:$0x3]
    %v138 = vpack.c.bf16 %v137, %v137
    %v139 = vld [vmem:[%s4] sm:$0xf]
    %v140 = vld [vmem:[%s4 + $0x4] sm:$0xf]
    %v141 = vld [vmem:[%s4 + $0x8] sm:$0xf]
    %v142 = vld [vmem:[%s4 + $0xc] sm:$0xf]
    %v143 = vld [vmem:[%s4 + $0x10] sm:$0xf]
    %v144 = vld [vmem:[%s4 + $0x14] sm:$0xf]
    %v145 = vld [vmem:[%s4 + $0x18] sm:$0xf]
    %v146 = vld [vmem:[%s4 + $0x1c] sm:$0xf]
    %v147 = vlaneseq
    %v148 = vshrl.u32 %v147, 7
    %v149 = vsub.s32 0, %v148
    %v150 = vrot.slane %v129, %v149
    %v159 = vunpack.c.l.b16 %v139
    %v160 = vunpack.c.l.b16 %v140
    %v161 = vunpack.c.l.b16 %v141
    %v162 = vunpack.c.l.b16 %v142
    %v163 = vunpack.c.l.b16 %v143
    %v164 = vunpack.c.l.b16 %v144
    %v165 = vunpack.c.l.b16 %v145
    %v166 = vunpack.c.l.b16 %v146
    %v167 = vpack.c.b16 %v160, %v159
    %v168 = vpack.c.b16 %v162, %v161
    %v169 = vpack.c.b16 %v164, %v163
    %v170 = vpack.c.b16 %v166, %v165
    %v176 = vsel %vm52, %v138, 0
    %178 = vmatprep.subr.bf16.mxu0 0
    %179 = vmatpush1.bf16.msra.mxu0 0
    %180 = vmatprep.subr.bf16.mxu0 0
    %181 = vmatpush1.bf16.msra.mxu0 0
    %182 = vmatprep.subr.bf16.mxu0 0
    %183 = vmatpush1.bf16.msra.mxu0 0
    %184 = vmatprep.subr.bf16.mxu0 0
    %185 = vmatpush1.bf16.msra.mxu0 0
    %186 = vmatprep.subr.bf16.mxu0 0
    %187 = vmatpush1.bf16.msra.mxu0 %v170
    %188 = vmatprep.subr.bf16.mxu0 0
    %189 = vmatpush1.bf16.msra.mxu0 %v169
    %190 = vmatprep.subr.bf16.mxu0 0
    %191 = vmatpush1.bf16.msra.mxu0 %v168
    %192 = vmatprep.subr.bf16.mxu0 0
    %193 = vmatpush1.bf16.msra.mxu0 %v167
    %194 = vmatprep.subr.bf16.mxu0 0
    %195 = vmatpush2.bf16.msra.mxu0 0
    %196 = vmatprep.subr.bf16.mxu0 0
    %197 = vmatpush2.bf16.msra.mxu0 0
    %198 = vmatprep.subr.bf16.mxu0 0
    %199 = vmatpush2.bf16.msra.mxu0 0
    %200 = vmatprep.subr.bf16.mxu0 0
    %201 = vmatpush2.bf16.msra.mxu0 0
    %202 = vmatprep.subr.bf16.mxu0 0
    %203 = vmatpush2.bf16.msra.mxu0 0
    %204 = vmatprep.subr.bf16.mxu0 0
    %205 = vmatpush2.bf16.msra.mxu0 0
    %206 = vmatprep.subr.bf16.mxu0 0
    %207 = vmatpush2.bf16.msra.mxu0 0
    %208 = vmatprep.subr.bf16.mxu0 0
    %209 = vmatpush2.bf16.msra.mxu0 0
    %210 = vmatprep.mubr.bf16.mxu0 0
    %211 = vmatmul.mubr.bf16.gmra.mxu0 %v176
    %v212 = vpop.f32.mrf.mxu0
    %v213 = vadd.f32 %v150, %v212
    %v214 = vpop.f32.mrf.mxu0
    %v215 = vpop.f32.mrf.mxu0
    %v216 = vpop.f32.mrf.mxu0
    %217 = vdwg.mxu0
    %v218 = vsub.f32 0.0, %v213
    %v219 = vmul.f32 %v218, 1.442695
    %v220 = vpow.pop %v219
    %v221 = vadd.f32 %v220, 1.0
    %v222 = vrcp.pop %v221
    %v223 = vmul.f32 1.0, %v222
    %v224 = vtanh.pop %v213
    %s225 = scalar_lea.vmem %s2, 4
    %v226 = vld [vmem:[%s225] sm:$0x3]
    %228 = vrot.lane.b32.xlu0 %v226, 32
    %v229 = vpop.permute.xlu0 %228
    %v231 = vmul.f32 %v223, %v229
    %233 = vrot.lane.b32.xlu0 %v224, 64
    %v234 = vpop.permute.xlu0 %233
    %v236 = vmul.f32 %v223, %v234
    %238 = vrot.lane.b32.xlu0 %v236, 32
    %v239 = vpop.permute.xlu0 %238
    %v241 = vadd.f32 %v231, %v239
    %v242 = vtanh.pop %v241
    %244 = vrot.lane.b32.xlu0 %v242, 64
    %v245 = vpop.permute.xlu0 %244
    %v247 = vmul.f32 %v223, %v245
    %249 = vrot.lane.b32.xlu0 %v247, 32
    %v250 = vpop.permute.xlu0 %249
    %252 = vst.msk [vmem:[#allocation2] sm:$0x3] %vm126, %v250
    %s253 = scalar_lea.vmem %s2, 2
    %v254 = vld [vmem:[%s253] sm:$0x3]
    %256 = vrot.lane.b32.xlu0 %v254, 32
    %v257 = vpop.permute.xlu0 %256
    %259 = vst.msk [vmem:[#allocation2] sm:$0x3] %vm135, %v257
    %v260 = vld [vmem:[#allocation2] sm:$0x3]
    %v261 = vpack.c.bf16 %v260, %v260
    %v262 = vld [vmem:[%s4 + $0x20] sm:$0xf]
    %v263 = vld [vmem:[%s4 + $0x24] sm:$0xf]
    %v264 = vld [vmem:[%s4 + $0x28] sm:$0xf]
    %v265 = vld [vmem:[%s4 + $0x2c] sm:$0xf]
    %v266 = vld [vmem:[%s4 + $0x30] sm:$0xf]
    %v267 = vld [vmem:[%s4 + $0x34] sm:$0xf]
    %v268 = vld [vmem:[%s4 + $0x38] sm:$0xf]
    %v269 = vld [vmem:[%s4 + $0x3c] sm:$0xf]
    %v270 = vlaneseq
    %v271 = vshrl.u32 %v270, 7
    %v272 = vsub.s32 1, %v271
    %v273 = vrot.slane %v129, %v272
    %v282 = vunpack.c.l.b16 %v262
    %v283 = vunpack.c.l.b16 %v263
    %v284 = vunpack.c.l.b16 %v264
    %v285 = vunpack.c.l.b16 %v265
    %v286 = vunpack.c.l.b16 %v266
    %v287 = vunpack.c.l.b16 %v267
    %v288 = vunpack.c.l.b16 %v268
    %v289 = vunpack.c.l.b16 %v269
    %v290 = vpack.c.b16 %v283, %v282
    %v291 = vpack.c.b16 %v285, %v284
    %v292 = vpack.c.b16 %v287, %v286
    %v293 = vpack.c.b16 %v289, %v288
    %v299 = vsel %vm52, %v261, 0
    %301 = vmatprep.subr.bf16.mxu0 0
    %302 = vmatpush1.bf16.msra.mxu0 0
    %303 = vmatprep.subr.bf16.mxu0 0
    %304 = vmatpush1.bf16.msra.mxu0 0
    %305 = vmatprep.subr.bf16.mxu0 0
    %306 = vmatpush1.bf16.msra.mxu0 0
    %307 = vmatprep.subr.bf16.mxu0 0
    %308 = vmatpush1.bf16.msra.mxu0 0
    %309 = vmatprep.subr.bf16.mxu0 0
    %310 = vmatpush1.bf16.msra.mxu0 %v293
    %311 = vmatprep.subr.bf16.mxu0 0
    %312 = vmatpush1.bf16.msra.mxu0 %v292
    %313 = vmatprep.subr.bf16.mxu0 0
    %314 = vmatpush1.bf16.msra.mxu0 %v291
    %315 = vmatprep.subr.bf16.mxu0 0
    %316 = vmatpush1.bf16.msra.mxu0 %v290
    %317 = vmatprep.subr.bf16.mxu0 0
    %318 = vmatpush2.bf16.msra.mxu0 0
    %319 = vmatprep.subr.bf16.mxu0 0
    %320 = vmatpush2.bf16.msra.mxu0 0
    %321 = vmatprep.subr.bf16.mxu0 0
    %322 = vmatpush2.bf16.msra.mxu0 0
    %323 = vmatprep.subr.bf16.mxu0 0
    %324 = vmatpush2.bf16.msra.mxu0 0
    %325 = vmatprep.subr.bf16.mxu0 0
    %326 = vmatpush2.bf16.msra.mxu0 0
    %327 = vmatprep.subr.bf16.mxu0 0
    %328 = vmatpush2.bf16.msra.mxu0 0
    %329 = vmatprep.subr.bf16.mxu0 0
    %330 = vmatpush2.bf16.msra.mxu0 0
    %331 = vmatprep.subr.bf16.mxu0 0
    %332 = vmatpush2.bf16.msra.mxu0 0
    %333 = vmatprep.mubr.bf16.mxu0 0
    %334 = vmatmul.mubr.bf16.gmra.mxu0 %v299
    %v335 = vpop.f32.mrf.mxu0
    %v336 = vadd.f32 %v273, %v335
    %v337 = vpop.f32.mrf.mxu0
    %v338 = vpop.f32.mrf.mxu0
    %v339 = vpop.f32.mrf.mxu0
    %340 = vdwg.mxu0
    %v341 = vsub.f32 0.0, %v336
    %v342 = vmul.f32 %v341, 1.442695
    %v343 = vpow.pop %v342
    %v344 = vadd.f32 %v343, 1.0
    %v345 = vrcp.pop %v344
    %v346 = vmul.f32 1.0, %v345
    %v347 = vtanh.pop %v336
    %s348 = scalar_lea.vmem %s2, 6
    %v349 = vld [vmem:[%s348] sm:$0x3]
    %351 = vrot.lane.b32.xlu0 %v349, 32
    %v352 = vpop.permute.xlu0 %351
    %v354 = vmul.f32 %v346, %v352
    %356 = vrot.lane.b32.xlu0 %v347, 64
    %v357 = vpop.permute.xlu0 %356
    %v359 = vmul.f32 %v346, %v357
    %361 = vrot.lane.b32.xlu0 %v359, 32
    %v362 = vpop.permute.xlu0 %361
    %v364 = vadd.f32 %v354, %v362
    %v365 = vtanh.pop %v364
    %367 = vrot.lane.b32.xlu0 %v365, 64
    %v368 = vpop.permute.xlu0 %367
    %v370 = vmul.f32 %v346, %v368
    %v371 = vpack.c.bf16 %v370, %v370
    %v372 = vld [vmem:[%s3] sm:$0xf]
    %v373 = vld [vmem:[%s3 + $0x4] sm:$0xf]
    %v374 = vld [vmem:[%s3 + $0x8] sm:$0xf]
    %v375 = vld [vmem:[%s3 + $0xc] sm:$0xf]
    %v376 = vld [vmem:[%s3 + $0x10] sm:$0xf]
    %v377 = vld [vmem:[%s3 + $0x14] sm:$0xf]
    %v378 = vld [vmem:[%s3 + $0x18] sm:$0xf]
    %v379 = vld [vmem:[%s3 + $0x1c] sm:$0xf]
    %v380 = vld [vmem:[%s3 + $0x20] sm:$0xf]
    %v381 = vld [vmem:[%s3 + $0x24] sm:$0xf]
    %v382 = vld [vmem:[%s3 + $0x28] sm:$0xf]
    %v383 = vld [vmem:[%s3 + $0x2c] sm:$0xf]
    %v384 = vld [vmem:[%s3 + $0x30] sm:$0xf]
    %v385 = vld [vmem:[%s3 + $0x34] sm:$0xf]
    %v386 = vld [vmem:[%s3 + $0x38] sm:$0xf]
    %v387 = vld [vmem:[%s3 + $0x3c] sm:$0xf]
    %v388 = vld [vmem:[%s3 + $0x40] sm:$0xf]
    %v389 = vld [vmem:[%s3 + $0x44] sm:$0xf]
    %v390 = vld [vmem:[%s3 + $0x48] sm:$0xf]
    %v391 = vld [vmem:[%s3 + $0x4c] sm:$0xf]
    %v392 = vld [vmem:[%s3 + $0x50] sm:$0xf]
    %v393 = vld [vmem:[%s3 + $0x54] sm:$0xf]
    %v394 = vld [vmem:[%s3 + $0x58] sm:$0xf]
    %v395 = vld [vmem:[%s3 + $0x5c] sm:$0xf]
    %v396 = vld [vmem:[%s3 + $0x60] sm:$0xf]
    %v397 = vld [vmem:[%s3 + $0x64] sm:$0xf]
    %v398 = vld [vmem:[%s3 + $0x68] sm:$0xf]
    %v399 = vld [vmem:[%s3 + $0x6c] sm:$0xf]
    %v400 = vld [vmem:[%s3 + $0x70] sm:$0xf]
    %v401 = vld [vmem:[%s3 + $0x74] sm:$0xf]
    %v402 = vld [vmem:[%s3 + $0x78] sm:$0xf]
    %v403 = vld [vmem:[%s3 + $0x7c] sm:$0xf]
    %v404 = vld [vmem:[%s4 + $0x40] sm:$0xf]
    %v405 = vld [vmem:[%s4 + $0x44] sm:$0xf]
    %v406 = vld [vmem:[%s4 + $0x48] sm:$0xf]
    %v407 = vld [vmem:[%s4 + $0x4c] sm:$0xf]
    %409 = vrot.lane.b32.xlu0 %v371, 32
    %v410 = vpop.permute.xlu0 %409
    %v415 = vunpack.c.l.b16 %v404
    %v416 = vunpack.c.l.b16 %v405
    %v417 = vunpack.c.l.b16 %v406
    %v418 = vunpack.c.l.b16 %v407
    %v419 = vpack.c.b16 %v416, %v415
    %v420 = vpack.c.b16 %v418, %v417
    %vm423 = vcmask 261120
    %v425 = vsel %vm423, %v410, 0
    %427 = vmatprep.subr.bf16.mxu0 0
    %428 = vmatpush1.bf16.msra.mxu0 0
    %429 = vmatprep.subr.bf16.mxu0 0
    %430 = vmatpush1.bf16.msra.mxu0 0
    %431 = vmatprep.subr.bf16.mxu0 0
    %432 = vmatpush1.bf16.msra.mxu0 0
    %433 = vmatprep.subr.bf16.mxu0 0
    %434 = vmatpush1.bf16.msra.mxu0 0
    %435 = vmatprep.subr.bf16.mxu0 0
    %436 = vmatpush1.bf16.msra.mxu0 0
    %437 = vmatprep.subr.bf16.mxu0 0
    %438 = vmatpush1.bf16.msra.mxu0 0
    %439 = vmatprep.subr.bf16.mxu0 0
    %440 = vmatpush1.bf16.msra.mxu0 %v420
    %441 = vmatprep.subr.bf16.mxu0 0
    %442 = vmatpush1.bf16.msra.mxu0 %v419
    %443 = vmatprep.subr.bf16.mxu0 0
    %444 = vmatpush2.bf16.msra.mxu0 0
    %445 = vmatprep.subr.bf16.mxu0 0
    %446 = vmatpush2.bf16.msra.mxu0 0
    %447 = vmatprep.subr.bf16.mxu0 0
    %448 = vmatpush2.bf16.msra.mxu0 0
    %449 = vmatprep.subr.bf16.mxu0 0
    %450 = vmatpush2.bf16.msra.mxu0 0
    %451 = vmatprep.subr.bf16.mxu0 0
    %452 = vmatpush2.bf16.msra.mxu0 0
    %453 = vmatprep.subr.bf16.mxu0 0
    %454 = vmatpush2.bf16.msra.mxu0 0
    %455 = vmatprep.subr.bf16.mxu0 0
    %456 = vmatpush2.bf16.msra.mxu0 0
    %457 = vmatprep.subr.bf16.mxu0 0
    %458 = vmatpush2.bf16.msra.mxu0 0
    %459 = vmatprep.mubr.bf16.mxu0 0
    %460 = vmatmul.mubr.bf16.gmra.mxu0 %v425
    %v461 = vpop.f32.mrf.mxu0
    %v462 = vadd.f32 0.0, %v461
    %v463 = vpop.f32.mrf.mxu0
    %v464 = vpop.f32.mrf.mxu0
    %v465 = vpop.f32.mrf.mxu0
    %466 = vdwg.mxu0
    %v467 = vpack.c.bf16 %v462, %v462
    %v484 = vunpack.c.l.b16 %v388
    %v485 = vunpack.c.l.b16 %v389
    %v486 = vunpack.c.l.b16 %v390
    %v487 = vunpack.c.l.b16 %v391
    %v488 = vunpack.c.l.b16 %v392
    %v489 = vunpack.c.l.b16 %v393
    %v490 = vunpack.c.l.b16 %v394
    %v491 = vunpack.c.l.b16 %v395
    %v492 = vunpack.c.l.b16 %v396
    %v493 = vunpack.c.l.b16 %v397
    %v494 = vunpack.c.l.b16 %v398
    %v495 = vunpack.c.l.b16 %v399
    %v496 = vunpack.c.l.b16 %v400
    %v497 = vunpack.c.l.b16 %v401
    %v498 = vunpack.c.l.b16 %v402
    %v499 = vunpack.c.l.b16 %v403
    %v500 = vpack.c.b16 %v485, %v484
    %v501 = vpack.c.b16 %v487, %v486
    %v502 = vpack.c.b16 %v489, %v488
    %v503 = vpack.c.b16 %v491, %v490
    %v504 = vpack.c.b16 %v493, %v492
    %v505 = vpack.c.b16 %v495, %v494
    %v506 = vpack.c.b16 %v497, %v496
    %v507 = vpack.c.b16 %v499, %v498
    %516 = vmatprep.subr.bf16.mxu0 0
    %517 = vmatpush1.bf16.msra.mxu0 %v507
    %518 = vmatprep.subr.bf16.mxu0 0
    %519 = vmatpush1.bf16.msra.mxu0 %v506
    %520 = vmatprep.subr.bf16.mxu0 0
    %521 = vmatpush1.bf16.msra.mxu0 %v505
    %522 = vmatprep.subr.bf16.mxu0 0
    %523 = vmatpush1.bf16.msra.mxu0 %v504
    %524 = vmatprep.subr.bf16.mxu0 0
    %525 = vmatpush1.bf16.msra.mxu0 %v503
    %526 = vmatprep.subr.bf16.mxu0 0
    %527 = vmatpush1.bf16.msra.mxu0 %v502
    %528 = vmatprep.subr.bf16.mxu0 0
    %529 = vmatpush1.bf16.msra.mxu0 %v501
    %530 = vmatprep.subr.bf16.mxu0 0
    %531 = vmatpush1.bf16.msra.mxu0 %v500
    %532 = vmatprep.subr.bf16.mxu0 0
    %533 = vmatpush2.bf16.msra.mxu0 0
    %534 = vmatprep.subr.bf16.mxu0 0
    %535 = vmatpush2.bf16.msra.mxu0 0
    %536 = vmatprep.subr.bf16.mxu0 0
    %537 = vmatpush2.bf16.msra.mxu0 0
    %538 = vmatprep.subr.bf16.mxu0 0
    %539 = vmatpush2.bf16.msra.mxu0 0
    %540 = vmatprep.subr.bf16.mxu0 0
    %541 = vmatpush2.bf16.msra.mxu0 0
    %542 = vmatprep.subr.bf16.mxu0 0
    %543 = vmatpush2.bf16.msra.mxu0 0
    %544 = vmatprep.subr.bf16.mxu0 0
    %545 = vmatpush2.bf16.msra.mxu0 0
    %546 = vmatprep.subr.bf16.mxu0 0
    %547 = vmatpush2.bf16.msra.mxu0 0
    %548 = vmatprep.mubr.bf16.mxu0 0
    %549 = vmatmul.mubr.bf16.gmra.mxu0 %v467
    %v550 = vpop.f32.mrf.mxu0
    %v551 = vadd.f32 0.0, %v550
    %v552 = vpop.f32.mrf.mxu0
    %v553 = vpop.f32.mrf.mxu0
    %v554 = vpop.f32.mrf.mxu0
    %555 = vdwg.mxu0
    %v556 = vmul.u32 %v27, 8
    %vm557 = vcmp.ge.s32.totalorder %v29, %v556
    %v558 = vadd.s32 %v27, 1
    %v559 = vmul.u32 %v558, 8
    %vm560 = vcmp.lt.s32.totalorder %v29, %v559
    %vm561 = vmand %vm557, %vm560
    %v562 = vsel %vm561, %v551, -1e+30
    %vm563 = vcmask 1041408
    %v564 = vsel %vm563, %v562, -inf
    %565 = vmax.xlane.f32.xlu0 %v564
    %v566 = vpop.xlane.xlu0 %565
    %v567 = vsub.f32 %v562, %v566
    %v568 = vmul.f32 %v567, 1.442695
    %v569 = vpow.pop %v568
    %v570 = vsel %vm563, %v569, 0.0
    %571 = vadd.xlane.f32.xlu0 %v570
    %v572 = vpop.xlane.xlu0 %571
    %v573 = vrcp.pop %v572
    %v574 = vmul.f32 %v569, %v573
    %v575 = vpack.c.bf16 %v574, %v574
    %v592 = vunpack.c.l.b16 %v372
    %v593 = vunpack.c.l.b16 %v373
    %v594 = vunpack.c.l.b16 %v374
    %v595 = vunpack.c.l.b16 %v375
    %v596 = vunpack.c.l.b16 %v376
    %v597 = vunpack.c.l.b16 %v377
    %v598 = vunpack.c.l.b16 %v378
    %v599 = vunpack.c.l.b16 %v379
    %v600 = vunpack.c.l.b16 %v380
    %v601 = vunpack.c.l.b16 %v381
    %v602 = vunpack.c.l.b16 %v382
    %v603 = vunpack.c.l.b16 %v383
    %v604 = vunpack.c.l.b16 %v384
    %v605 = vunpack.c.l.b16 %v385
    %v606 = vunpack.c.l.b16 %v386
    %v607 = vunpack.c.l.b16 %v387
    %v608 = vpack.c.b16 %v593, %v592
    %v609 = vpack.c.b16 %v595, %v594
    %v610 = vpack.c.b16 %v597, %v596
    %v611 = vpack.c.b16 %v599, %v598
    %v612 = vpack.c.b16 %v601, %v600
    %v613 = vpack.c.b16 %v603, %v602
    %v614 = vpack.c.b16 %v605, %v604
    %v615 = vpack.c.b16 %v607, %v606
    %624 = vmatprep.subr.bf16.mxu0 0
    %625 = vmatpush1.bf16.msra.mxu0 %v615
    %626 = vmatprep.subr.bf16.mxu0 0
    %627 = vmatpush1.bf16.msra.mxu0 %v614
    %628 = vmatprep.subr.bf16.mxu0 0
    %629 = vmatpush1.bf16.msra.mxu0 %v613
    %630 = vmatprep.subr.bf16.mxu0 0
    %631 = vmatpush1.bf16.msra.mxu0 %v612
    %632 = vmatprep.subr.bf16.mxu0 0
    %633 = vmatpush1.bf16.msra.mxu0 %v611
    %634 = vmatprep.subr.bf16.mxu0 0
    %635 = vmatpush1.bf16.msra.mxu0 %v610
    %636 = vmatprep.subr.bf16.mxu0 0
    %637 = vmatpush1.bf16.msra.mxu0 %v609
    %638 = vmatprep.subr.bf16.mxu0 0
    %639 = vmatpush1.bf16.msra.mxu0 %v608
    %640 = vmatprep.subr.bf16.mxu0 0
    %641 = vmatpush2.bf16.msra.mxu0 0
    %642 = vmatprep.subr.bf16.mxu0 0
    %643 = vmatpush2.bf16.msra.mxu0 0
    %644 = vmatprep.subr.bf16.mxu0 0
    %645 = vmatpush2.bf16.msra.mxu0 0
    %646 = vmatprep.subr.bf16.mxu0 0
    %647 = vmatpush2.bf16.msra.mxu0 0
    %648 = vmatprep.subr.bf16.mxu0 0
    %649 = vmatpush2.bf16.msra.mxu0 0
    %650 = vmatprep.subr.bf16.mxu0 0
    %651 = vmatpush2.bf16.msra.mxu0 0
    %652 = vmatprep.subr.bf16.mxu0 0
    %653 = vmatpush2.bf16.msra.mxu0 0
    %654 = vmatprep.subr.bf16.mxu0 0
    %655 = vmatpush2.bf16.msra.mxu0 0
    %656 = vmatprep.mubr.bf16.mxu0 0
    %657 = vmatmul.mubr.bf16.gmra.mxu0 %v575
    %v658 = vpop.f32.mrf.mxu0
    %v659 = vadd.f32 0.0, %v658
    %v660 = vpop.f32.mrf.mxu0
    %v661 = vpop.f32.mrf.mxu0
    %v662 = vpop.f32.mrf.mxu0
    %663 = vdwg.mxu0
    %v664 = vpack.c.bf16 %v659, %v659
    %v665 = vld [vmem:[%s4 + $0x50] sm:$0xf]
    %v666 = vld [vmem:[%s4 + $0x54] sm:$0xf]
    %v667 = vld [vmem:[%s4 + $0x58] sm:$0xf]
    %v668 = vld [vmem:[%s4 + $0x5c] sm:$0xf]
    %v669 = vld [vmem:[%s4 + $0x60] sm:$0xf]
    %v670 = vld [vmem:[%s4 + $0x64] sm:$0xf]
    %v671 = vld [vmem:[%s4 + $0x68] sm:$0xf]
    %v672 = vld [vmem:[%s4 + $0x6c] sm:$0xf]
    %v673 = vld [vmem:[%s4 + $0x70] sm:$0xf]
    %v674 = vld [vmem:[%s4 + $0x74] sm:$0xf]
    %v675 = vld [vmem:[%s4 + $0x78] sm:$0xf]
    %v676 = vld [vmem:[%s4 + $0x7c] sm:$0xf]
    %v677 = vld [vmem:[%s4 + $0x80] sm:$0xf]
    %v678 = vld [vmem:[%s4 + $0x84] sm:$0xf]
    %v679 = vld [vmem:[%s4 + $0x88] sm:$0xf]
    %v680 = vld [vmem:[%s4 + $0x8c] sm:$0xf]
    %v681 = vld [vmem:[%s4 + $0x90] sm:$0xf]
    %v682 = vld [vmem:[%s4 + $0x94] sm:$0xf]
    %v683 = vld [vmem:[%s4 + $0x98] sm:$0xf]
    %v684 = vld [vmem:[%s4 + $0x9c] sm:$0xf]
    %v689 = vunpack.c.l.b16 %v681
    %v690 = vunpack.c.l.b16 %v682
    %v691 = vunpack.c.l.b16 %v683
    %v692 = vunpack.c.l.b16 %v684
    %v693 = vpack.c.b16 %v690, %v689
    %v694 = vpack.c.b16 %v692, %v691
    %697 = vmatprep.subr.bf16.mxu0 0
    %698 = vmatpush1.bf16.msra.mxu0 0
    %699 = vmatprep.subr.bf16.mxu0 0
    %700 = vmatpush1.bf16.msra.mxu0 0
    %701 = vmatprep.subr.bf16.mxu0 0
    %702 = vmatpush1.bf16.msra.mxu0 0
    %703 = vmatprep.subr.bf16.mxu0 0
    %704 = vmatpush1.bf16.msra.mxu0 0
    %705 = vmatprep.subr.bf16.mxu0 0
    %706 = vmatpush1.bf16.msra.mxu0 0
    %707 = vmatprep.subr.bf16.mxu0 0
    %708 = vmatpush1.bf16.msra.mxu0 0
    %709 = vmatprep.subr.bf16.mxu0 0
    %710 = vmatpush1.bf16.msra.mxu0 %v694
    %711 = vmatprep.subr.bf16.mxu0 0
    %712 = vmatpush1.bf16.msra.mxu0 %v693
    %713 = vmatprep.subr.bf16.mxu0 0
    %714 = vmatpush2.bf16.msra.mxu0 0
    %715 = vmatprep.subr.bf16.mxu0 0
    %716 = vmatpush2.bf16.msra.mxu0 0
    %717 = vmatprep.subr.bf16.mxu0 0
    %718 = vmatpush2.bf16.msra.mxu0 0
    %719 = vmatprep.subr.bf16.mxu0 0
    %720 = vmatpush2.bf16.msra.mxu0 0
    %721 = vmatprep.subr.bf16.mxu0 0
    %722 = vmatpush2.bf16.msra.mxu0 0
    %723 = vmatprep.subr.bf16.mxu0 0
    %724 = vmatpush2.bf16.msra.mxu0 0
    %725 = vmatprep.subr.bf16.mxu0 0
    %726 = vmatpush2.bf16.msra.mxu0 0
    %727 = vmatprep.subr.bf16.mxu0 0
    %728 = vmatpush2.bf16.msra.mxu0 0
    %729 = vmatprep.mubr.bf16.mxu0 0
    %730 = vmatmul.mubr.bf16.gmra.mxu0 %v425
    %v731 = vpop.f32.mrf.mxu0
    %v732 = vadd.f32 0.0, %v731
    %v733 = vpop.f32.mrf.mxu0
    %v734 = vpop.f32.mrf.mxu0
    %v735 = vpop.f32.mrf.mxu0
    %736 = vdwg.mxu0
    %v753 = vunpack.c.l.b16 %v665
    %v754 = vunpack.c.l.b16 %v666
    %v755 = vunpack.c.l.b16 %v667
    %v756 = vunpack.c.l.b16 %v668
    %v757 = vunpack.c.l.b16 %v669
    %v758 = vunpack.c.l.b16 %v670
    %v759 = vunpack.c.l.b16 %v671
    %v760 = vunpack.c.l.b16 %v672
    %v761 = vunpack.c.l.b16 %v673
    %v762 = vunpack.c.l.b16 %v674
    %v763 = vunpack.c.l.b16 %v675
    %v764 = vunpack.c.l.b16 %v676
    %v765 = vunpack.c.l.b16 %v677
    %v766 = vunpack.c.l.b16 %v678
    %v767 = vunpack.c.l.b16 %v679
    %v768 = vunpack.c.l.b16 %v680
    %v769 = vpack.c.b16 %v754, %v753
    %v770 = vpack.c.b16 %v756, %v755
    %v771 = vpack.c.b16 %v758, %v757
    %v772 = vpack.c.b16 %v760, %v759
    %v773 = vpack.c.b16 %v762, %v761
    %v774 = vpack.c.b16 %v764, %v763
    %v775 = vpack.c.b16 %v766, %v765
    %v776 = vpack.c.b16 %v768, %v767
    %785 = vmatprep.subr.bf16.mxu0 0
    %786 = vmatpush1.bf16.msra.mxu0 %v776
    %787 = vmatprep.subr.bf16.mxu0 0
    %788 = vmatpush1.bf16.msra.mxu0 %v775
    %789 = vmatprep.subr.bf16.mxu0 0
    %790 = vmatpush1.bf16.msra.mxu0 %v774
    %791 = vmatprep.subr.bf16.mxu0 0
    %792 = vmatpush1.bf16.msra.mxu0 %v773
    %793 = vmatprep.subr.bf16.mxu0 0
    %794 = vmatpush1.bf16.msra.mxu0 %v772
    %795 = vmatprep.subr.bf16.mxu0 0
    %796 = vmatpush1.bf16.msra.mxu0 %v771
    %797 = vmatprep.subr.bf16.mxu0 0
    %798 = vmatpush1.bf16.msra.mxu0 %v770
    %799 = vmatprep.subr.bf16.mxu0 0
    %800 = vmatpush1.bf16.msra.mxu0 %v769
    %801 = vmatprep.subr.bf16.mxu0 0
    %802 = vmatpush2.bf16.msra.mxu0 0
    %803 = vmatprep.subr.bf16.mxu0 0
    %804 = vmatpush2.bf16.msra.mxu0 0
    %805 = vmatprep.subr.bf16.mxu0 0
    %806 = vmatpush2.bf16.msra.mxu0 0
    %807 = vmatprep.subr.bf16.mxu0 0
    %808 = vmatpush2.bf16.msra.mxu0 0
    %809 = vmatprep.subr.bf16.mxu0 0
    %810 = vmatpush2.bf16.msra.mxu0 0
    %811 = vmatprep.subr.bf16.mxu0 0
    %812 = vmatpush2.bf16.msra.mxu0 0
    %813 = vmatprep.subr.bf16.mxu0 0
    %814 = vmatpush2.bf16.msra.mxu0 0
    %815 = vmatprep.subr.bf16.mxu0 0
    %816 = vmatpush2.bf16.msra.mxu0 0
    %817 = vmatprep.mubr.bf16.mxu0 0
    %818 = vmatmul.mubr.bf16.gmra.mxu0 %v664
    %v819 = vpop.f32.mrf.mxu0
    %v820 = vadd.f32 %v732, %v819
    %v821 = vpop.f32.mrf.mxu0
    %v822 = vpop.f32.mrf.mxu0
    %v823 = vpop.f32.mrf.mxu0
    %824 = vdwg.mxu0
    %v825 = vlaneseq
    %v826 = vshrl.u32 %v825, 7
    %v827 = vsub.s32 2, %v826
    %v828 = vrot.slane %v129, %v827
    %v829 = vadd.f32 %v820, %v828
    %v830 = vtanh.pop %v829
    %v831 = vpack.c.bf16 %v830, %v830
    %v832 = vld [vmem:[%s4 + $0xa0] sm:$0xf]
    %v833 = vld [vmem:[%s4 + $0xa4] sm:$0xf]
    %v834 = vld [vmem:[%s4 + $0xa8] sm:$0xf]
    %v835 = vld [vmem:[%s4 + $0xac] sm:$0xf]
    %v836 = vld [vmem:[%s4 + $0xb0] sm:$0xf]
    %v837 = vld [vmem:[%s4 + $0xb4] sm:$0xf]
    %v838 = vld [vmem:[%s4 + $0xb8] sm:$0xf]
    %v839 = vld [vmem:[%s4 + $0xbc] sm:$0xf]
    %v840 = vld [vmem:[%s4 + $0xc0] sm:$0xf]
    %v841 = vld [vmem:[%s4 + $0xc4] sm:$0xf]
    %v842 = vld [vmem:[%s4 + $0xc8] sm:$0xf]
    %v843 = vld [vmem:[%s4 + $0xcc] sm:$0xf]
    %v844 = vld [vmem:[%s4 + $0xd0] sm:$0xf]
    %v845 = vld [vmem:[%s4 + $0xd4] sm:$0xf]
    %v846 = vld [vmem:[%s4 + $0xd8] sm:$0xf]
    %v847 = vld [vmem:[%s4 + $0xdc] sm:$0xf]
    %v848 = vlaneseq
    %v849 = vshrl.u32 %v848, 7
    %v850 = vsub.s32 3, %v849
    %v851 = vrot.slane %v129, %v850
    %v868 = vunpack.c.l.b16 %v832
    %v869 = vunpack.c.l.b16 %v833
    %v870 = vunpack.c.l.b16 %v834
    %v871 = vunpack.c.l.b16 %v835
    %v872 = vunpack.c.l.b16 %v836
    %v873 = vunpack.c.l.b16 %v837
    %v874 = vunpack.c.l.b16 %v838
    %v875 = vunpack.c.l.b16 %v839
    %v876 = vunpack.c.l.b16 %v840
    %v877 = vunpack.c.l.b16 %v841
    %v878 = vunpack.c.l.b16 %v842
    %v879 = vunpack.c.l.b16 %v843
    %v880 = vunpack.c.l.b16 %v844
    %v881 = vunpack.c.l.b16 %v845
    %v882 = vunpack.c.l.b16 %v846
    %v883 = vunpack.c.l.b16 %v847
    %v884 = vpack.c.b16 %v869, %v868
    %v885 = vpack.c.b16 %v871, %v870
    %v886 = vpack.c.b16 %v873, %v872
    %v887 = vpack.c.b16 %v875, %v874
    %v888 = vpack.c.b16 %v877, %v876
    %v889 = vpack.c.b16 %v879, %v878
    %v890 = vpack.c.b16 %v881, %v880
    %v891 = vpack.c.b16 %v883, %v882
    %900 = vmatprep.subr.bf16.mxu0 0
    %901 = vmatpush1.bf16.msra.mxu0 %v891
    %902 = vmatprep.subr.bf16.mxu0 0
    %903 = vmatpush1.bf16.msra.mxu0 %v890
    %904 = vmatprep.subr.bf16.mxu0 0
    %905 = vmatpush1.bf16.msra.mxu0 %v889
    %906 = vmatprep.subr.bf16.mxu0 0
    %907 = vmatpush1.bf16.msra.mxu0 %v888
    %908 = vmatprep.subr.bf16.mxu0 0
    %909 = vmatpush1.bf16.msra.mxu0 %v887
    %910 = vmatprep.subr.bf16.mxu0 0
    %911 = vmatpush1.bf16.msra.mxu0 %v886
    %912 = vmatprep.subr.bf16.mxu0 0
    %913 = vmatpush1.bf16.msra.mxu0 %v885
    %914 = vmatprep.subr.bf16.mxu0 0
    %915 = vmatpush1.bf16.msra.mxu0 %v884
    %916 = vmatprep.subr.bf16.mxu0 0
    %917 = vmatpush2.bf16.msra.mxu0 0
    %918 = vmatprep.subr.bf16.mxu0 0
    %919 = vmatpush2.bf16.msra.mxu0 0
    %920 = vmatprep.subr.bf16.mxu0 0
    %921 = vmatpush2.bf16.msra.mxu0 0
    %922 = vmatprep.subr.bf16.mxu0 0
    %923 = vmatpush2.bf16.msra.mxu0 0
    %924 = vmatprep.subr.bf16.mxu0 0
    %925 = vmatpush2.bf16.msra.mxu0 0
    %926 = vmatprep.subr.bf16.mxu0 0
    %927 = vmatpush2.bf16.msra.mxu0 0
    %928 = vmatprep.subr.bf16.mxu0 0
    %929 = vmatpush2.bf16.msra.mxu0 0
    %930 = vmatprep.subr.bf16.mxu0 0
    %931 = vmatpush2.bf16.msra.mxu0 0
    %932 = vmatprep.mubr.bf16.mxu0 0
    %933 = vmatmul.mubr.bf16.gmra.mxu0 %v831
    %v934 = vpop.f32.mrf.mxu0
    %v935 = vadd.f32 %v851, %v934
    %v936 = vpop.f32.mrf.mxu0
    %v937 = vpop.f32.mrf.mxu0
    %v938 = vpop.f32.mrf.mxu0
    %939 = vdwg.mxu0
    %940 = vst [vmem:[#allocation5] sm:$0x3] %v935
    // Predicated region
    $region18: #{decoder_forward.1} parent=1 // pred_check
      _
    $region19: #{decoder_forward.1} parent=1 // pred_check_branch
      %942 = sbr.rel (0) target = $region21
    $region20: #{decoder_forward.1} parent=1 // pred_region
      %s944 = ssub.s32 32, 32
      %945 = vsyncadd [#allocation6], %s944
      %s947 = sshll.u32 [#allocation5], 4
      %s948 = int_to_ptr.vmem [resolvable:$true] %s947
      %950 = dma.vmem_to_hbm [thread:$0]  %s948, 32, %s5, [#allocation6]
    $region21: #{decoder_forward.1} parent=1 // pred_fallthru
      _
    // Predicated region
    $region22: #{decoder_forward.1} parent=1 // pred_check
      _
    $region23: #{decoder_forward.1} parent=1 // pred_check_branch
      %952 = sbr.rel (0) target = $region25
    $region24: #{decoder_forward.1} parent=1 // pred_region
      %953 = dma.done [#allocation6], 32
    $region25: #{decoder_forward.1} parent=1 // pred_fallthru
      _
    %954 = vsyncpa [#allocation6], 1

</llo_original>
